<compile_context>
chip_gen: v7x
topology: tpu7x:2x2x1
jax: 0.10.0
libtpu: 0.0.40
codegen_flags: <defaults>
</compile_context>

<pallas_src>
import functools

import jax
import jax.numpy as jnp
from jax.experimental import pallas as pl
from jax.experimental.pallas import tpu as pltpu

NUM_HIDDEN = 256
_LANE = 128


def _round_up(n, m):
    return ((n + m - 1) // m) * m


def _rmcl_kernel(num_hyp, x_ref, w1_ref, b1_ref, w2_ref, b2_ref,
                 whc_ref, bhc_ref, out_ref):
    """One batch tile: x [TB, 1] -> out [TB, N_pad] = [hyp(2K) | conf(K) | 0-pad]."""
    compute_dtype = w2_ref.dtype

    # fc1 (in_features == 1): degenerate matmul -> broadcasted multiply (VPU),
    # kept in f32 (elementwise path stays f32 on all generations).
    x = x_ref[...].astype(jnp.float32)                     # [TB, 1]
    h = x * w1_ref[...] + b1_ref[...]                      # [TB, H]
    h = jnp.maximum(h, 0.0)                                # relu1

    # fc2: [TB, H] @ [H, H] on the MXU, compute-dtype operands, f32 accumulate.
    h = jnp.dot(h.astype(compute_dtype), w2_ref[...],
                preferred_element_type=jnp.float32) + b2_ref[...]
    h = jnp.maximum(h, 0.0)                                # relu2

    # All hypothesis + confidence heads fused into one lane-dense matmul.
    out = jnp.dot(h.astype(compute_dtype), whc_ref[...],
                  preferred_element_type=jnp.float32) + bhc_ref[...]

    # Sigmoid only on confidence columns [2K, 3K); mask with a lane iota so the
    # output store stays one full-lane-width store.
    col = jax.lax.broadcasted_iota(jnp.int32, out.shape, 1)
    is_conf = (col >= 2 * num_hyp) & (col < 3 * num_hyp)
    out = jnp.where(is_conf, jax.nn.sigmoid(out), out)

    out_ref[...] = out.astype(out_ref.dtype)


def rmcl_forward(x, params, num_hypothesis, *, block_batch=512,
                 compute_dtype=jnp.bfloat16):
    """x: [batch, 1] float32. Returns (hyp [B, K, 2], conf [B, K, 1])."""
    B = x.shape[0]
    K = num_hypothesis
    H = NUM_HIDDEN
    w1, b1, w2, b2, wh, bh, wc, bc = params

    # Fuse and zero-pad the heads: [wh | wc | 0] -> [H, N_pad], N_pad % 128 == 0.
    n_real = 3 * K
    n_pad = _round_up(n_real, _LANE)
    whc = (jnp.zeros((H, n_pad), jnp.float32)
           .at[:, :2 * K].set(wh)
           .at[:, 2 * K:n_real].set(wc))
    bhc = (jnp.zeros((1, n_pad), jnp.float32)
           .at[:, :2 * K].set(bh)
           .at[:, 2 * K:n_real].set(bc))

    # Matmul operands in compute_dtype (bf16 by default); biases stay f32.
    # TODO(synk): on v7x, w2 could additionally be fp8-quantized with a scale.
    w2_c = w2.astype(compute_dtype)
    whc_c = whc.astype(compute_dtype)

    # Batch tiling: TB rows per grid step (multiple of 8 sublanes); pad B up.
    tb = min(_round_up(block_batch, 8), _round_up(B, 8))
    b_padded = _round_up(B, tb)
    if b_padded != B:
        x = jnp.pad(x, ((0, b_padded - B), (0, 0)))
    grid = (b_padded // tb,)

    row_map = lambda i: (i, 0)   # blocks that walk the batch
    rep_map = lambda i: (0, 0)   # resident blocks (weights / biases)

    out = pl.pallas_call(
        functools.partial(_rmcl_kernel, K),
        out_shape=jax.ShapeDtypeStruct((b_padded, n_pad), jnp.float32),
        grid=grid,
        in_specs=[
            pl.BlockSpec((tb, 1), row_map),       # x
            pl.BlockSpec((1, H), rep_map),        # w1 (f32)
            pl.BlockSpec((1, H), rep_map),        # b1 (f32)
            pl.BlockSpec((H, H), rep_map),        # w2 (compute dtype)
            pl.BlockSpec((1, H), rep_map),        # b2 (f32)
            pl.BlockSpec((H, n_pad), rep_map),    # fused head weight (compute dtype)
            pl.BlockSpec((1, n_pad), rep_map),    # fused head bias (f32)
        ],
        out_specs=pl.BlockSpec((tb, n_pad), row_map),
        compiler_params=pltpu.CompilerParams(
            dimension_semantics=("parallel",),    # v7x: shard batch over both TCs
        ),
    )(x, w1, b1, w2_c, b2, whc_c, bhc)

    hyp = out[:B, :2 * K].reshape(B, K, 2)
    conf = out[:B, 2 * K:3 * K].reshape(B, K, 1)
    return hyp, conf


def init_params(key, num_hypothesis):
    """Deterministic parameter init mirroring the PyTorch module shapes."""
    H = NUM_HIDDEN
    K = num_hypothesis
    ks = jax.random.split(key, 8)
    # fc1: Linear(1 -> 256)
    w1 = jax.random.normal(ks[0], (1, H), jnp.float32) * 0.5
    b1 = jax.random.normal(ks[1], (1, H), jnp.float32) * 0.1
    # fc2: Linear(256 -> 256)
    w2 = jax.random.normal(ks[2], (H, H), jnp.float32) * (1.0 / jnp.sqrt(H))
    b2 = jax.random.normal(ks[3], (1, H), jnp.float32) * 0.1
    # K hypothesis heads Linear(256 -> 2), concatenated -> [256, 2K]
    wh = jax.random.normal(ks[4], (H, 2 * K), jnp.float32) * (1.0 / jnp.sqrt(H))
    bh = jax.random.normal(ks[5], (1, 2 * K), jnp.float32) * 0.1
    # K confidence heads Linear(256 -> 1), concatenated -> [256, K]
    wc = jax.random.normal(ks[6], (H, K), jnp.float32) * (1.0 / jnp.sqrt(H))
    bc = jax.random.normal(ks[7], (1, K), jnp.float32) * 0.1
    return (w1, b1, w2, b2, wh, bh, wc, bc)


def rmcl_reference(x, params):
    """Plain-JAX (f32) reference of the PyTorch forward for a sanity check."""
    w1, b1, w2, b2, wh, bh, wc, bc = params
    h = jnp.maximum(x @ w1 + b1, 0.0)
    h = jnp.maximum(h @ w2 + b2, 0.0)
    hyp = (h @ wh + bh).reshape(x.shape[0], -1, 2)
    conf = jax.nn.sigmoid(h @ wc + bc).reshape(x.shape[0], -1, 1)
    return hyp, conf


if __name__ == "__main__":
    num_hypothesis = 4
    batch = 8

    key = jax.random.PRNGKey(0)
    k_params, k_x, k_x2 = jax.random.split(key, 3)
    params = init_params(k_params, num_hypothesis)
    x = jax.random.normal(k_x, (batch, 1), jnp.float32)

    hyp_ref, conf_ref = rmcl_reference(x, params)

    # 1) f32 compute path: structural check (fusion/padding/masking) at tight tol.
    hyp32, conf32 = rmcl_forward(x, params, num_hypothesis,
                                 compute_dtype=jnp.float32)
    jax.block_until_ready((hyp32, conf32))
    assert hyp32.shape == (batch, num_hypothesis, 2)
    assert conf32.shape == (batch, num_hypothesis, 1)
    assert jnp.allclose(hyp32, hyp_ref, atol=1e-4, rtol=1e-4)
    assert jnp.allclose(conf32, conf_ref, atol=1e-5, rtol=1e-4)

    # 2) Default bf16 matmul path (looser tolerance, per bf16 precision).
    hyp, conf = rmcl_forward(x, params, num_hypothesis)
    jax.block_until_ready((hyp, conf))
    assert hyp.shape == (batch, num_hypothesis, 2)
    assert conf.shape == (batch, num_hypothesis, 1)
    assert jnp.allclose(hyp, hyp_ref, atol=3e-2, rtol=3e-2)
    assert jnp.allclose(conf, conf_ref, atol=2e-2, rtol=3e-2)

    # 3) Multi-step grid + batch padding check (small shapes, small tile).
    batch2 = 40
    x2 = jax.random.normal(k_x2, (batch2, 1), jnp.float32)
    hyp2, conf2 = rmcl_forward(x2, params, num_hypothesis,
                               block_batch=16, compute_dtype=jnp.float32)
    jax.block_until_ready((hyp2, conf2))
    hyp2_ref, conf2_ref = rmcl_reference(x2, params)
    assert hyp2.shape == (batch2, num_hypothesis, 2)
    assert conf2.shape == (batch2, num_hypothesis, 1)
    assert jnp.allclose(hyp2, hyp2_ref, atol=1e-4, rtol=1e-4)
    assert jnp.allclose(conf2, conf2_ref, atol=1e-5, rtol=1e-4)

    print("KERNEL_OK")
</pallas_src>

<mosaic_0001>
module attributes {stable_mosaic.version = 11 : i64} {
  func.func @_rmcl_kernel(%arg0: i32, %arg1: memref<8x1xf32, #tpu.memory_space<vmem>>, %arg2: memref<1x256xf32, #tpu.memory_space<vmem>>, %arg3: memref<1x256xf32, #tpu.memory_space<vmem>>, %arg4: memref<256x256xf32, #tpu.memory_space<vmem>>, %arg5: memref<1x256xf32, #tpu.memory_space<vmem>>, %arg6: memref<256x128xf32, #tpu.memory_space<vmem>>, %arg7: memref<1x128xf32, #tpu.memory_space<vmem>>, %arg8: memref<8x128xf32, #tpu.memory_space<vmem>>) attributes {dimension_semantics = [#tpu.dimension_semantics<parallel>], iteration_bounds = array<i64: 1>, scalar_prefetch = 0 : i64, scratch_operands = 0 : i64, tpu.core_type = #tpu.core_type<tc>, window_params = [{transform_indices = @transform_0, window_bounds = array<i64: 8, 1>}, {pipeline_mode = #tpu.pipeline_mode<synchronous>, transform_indices = @transform_1, window_bounds = array<i64: 1, 256>}, {pipeline_mode = #tpu.pipeline_mode<synchronous>, transform_indices = @transform_2, window_bounds = array<i64: 1, 256>}, {pipeline_mode = #tpu.pipeline_mode<synchronous>, transform_indices = @transform_3, window_bounds = array<i64: 256, 256>}, {pipeline_mode = #tpu.pipeline_mode<synchronous>, transform_indices = @transform_4, window_bounds = array<i64: 1, 256>}, {pipeline_mode = #tpu.pipeline_mode<synchronous>, transform_indices = @transform_5, window_bounds = array<i64: 256, 128>}, {pipeline_mode = #tpu.pipeline_mode<synchronous>, transform_indices = @transform_6, window_bounds = array<i64: 1, 128>}, {transform_indices = @transform_7, window_bounds = array<i64: 8, 128>}]} {
    %c0 = arith.constant 0 : index
    %c0_0 = arith.constant 0 : index
    %0 = vector.load %arg1[%c0, %c0_0] : memref<8x1xf32, #tpu.memory_space<vmem>>, vector<8x1xf32>
    %c0_1 = arith.constant 0 : index
    %c0_2 = arith.constant 0 : index
    %1 = vector.load %arg2[%c0_1, %c0_2] : memref<1x256xf32, #tpu.memory_space<vmem>>, vector<1x256xf32>
    %2 = vector.broadcast %0 : vector<8x1xf32> to vector<8x256xf32>
    %3 = vector.broadcast %1 : vector<1x256xf32> to vector<8x256xf32>
    %4 = arith.mulf %2, %3 : vector<8x256xf32>
    %c0_3 = arith.constant 0 : index
    %c0_4 = arith.constant 0 : index
    %5 = vector.load %arg3[%c0_3, %c0_4] : memref<1x256xf32, #tpu.memory_space<vmem>>, vector<1x256xf32>
    %6 = vector.broadcast %5 : vector<1x256xf32> to vector<8x256xf32>
    %7 = arith.addf %4, %6 : vector<8x256xf32>
    %cst = arith.constant 0.000000e+00 : f32
    %8 = vector.broadcast %cst : f32 to vector<8x256xf32>
    %9 = arith.maximumf %7, %8 : vector<8x256xf32>
    %c0_5 = arith.constant 0 : index
    %c0_6 = arith.constant 0 : index
    %10 = vector.load %arg4[%c0_5, %c0_6] : memref<256x256xf32, #tpu.memory_space<vmem>>, vector<256x256xf32>
    %cst_7 = arith.constant dense<0.000000e+00> : vector<8x256xf32>
    %11 = tpu.matmul %9, %10, %cst_7 {dimension_numbers = #tpu.dot_dimension_numbers<[1], [0], [0], [1], [0, 0, 1, 1], [], []>} : vector<8x256xf32>, vector<256x256xf32>, vector<8x256xf32> -> vector<8x256xf32>
    %c0_8 = arith.constant 0 : index
    %c0_9 = arith.constant 0 : index
    %12 = vector.load %arg5[%c0_8, %c0_9] : memref<1x256xf32, #tpu.memory_space<vmem>>, vector<1x256xf32>
    %13 = vector.broadcast %12 : vector<1x256xf32> to vector<8x256xf32>
    %14 = arith.addf %11, %13 : vector<8x256xf32>
    %cst_10 = arith.constant 0.000000e+00 : f32
    %15 = vector.broadcast %cst_10 : f32 to vector<8x256xf32>
    %16 = arith.maximumf %14, %15 : vector<8x256xf32>
    %c0_11 = arith.constant 0 : index
    %c0_12 = arith.constant 0 : index
    %17 = vector.load %arg6[%c0_11, %c0_12] : memref<256x128xf32, #tpu.memory_space<vmem>>, vector<256x128xf32>
    %cst_13 = arith.constant dense<0.000000e+00> : vector<8x128xf32>
    %18 = tpu.matmul %16, %17, %cst_13 {dimension_numbers = #tpu.dot_dimension_numbers<[1], [0], [0], [1], [0, 0, 1, 1], [], []>} : vector<8x256xf32>, vector<256x128xf32>, vector<8x128xf32> -> vector<8x128xf32>
    %c0_14 = arith.constant 0 : index
    %c0_15 = arith.constant 0 : index
    %19 = vector.load %arg7[%c0_14, %c0_15] : memref<1x128xf32, #tpu.memory_space<vmem>>, vector<1x128xf32>
    %20 = vector.broadcast %19 : vector<1x128xf32> to vector<8x128xf32>
    %21 = arith.addf %18, %20 : vector<8x128xf32>
    %22 = tpu.iota {dimensions = array<i32: 1>} : vector<8x128xi32>
    %c8_i32 = arith.constant 8 : i32
    %23 = vector.broadcast %c8_i32 : i32 to vector<8x128xi32>
    %24 = arith.cmpi sge, %22, %23 : vector<8x128xi32>
    %c12_i32 = arith.constant 12 : i32
    %25 = vector.broadcast %c12_i32 : i32 to vector<8x128xi32>
    %26 = arith.cmpi slt, %22, %25 : vector<8x128xi32>
    %27 = arith.andi %24, %26 : vector<8x128xi1>
    %28 = arith.negf %21 : vector<8x128xf32>
    %29 = math.exp %28 : vector<8x128xf32>
    %cst_16 = arith.constant 1.000000e+00 : f32
    %30 = vector.broadcast %cst_16 : f32 to vector<8x128xf32>
    %31 = arith.addf %30, %29 : vector<8x128xf32>
    %32 = arith.divf %30, %31 : vector<8x128xf32>
    %33 = arith.select %27, %32, %21 : vector<8x128xi1>, vector<8x128xf32>
    %c0_17 = arith.constant 0 : index
    %c0_18 = arith.constant 0 : index
    %34 = vector.load %arg8[%c0_17, %c0_18] : memref<8x128xf32, #tpu.memory_space<vmem>>, vector<8x128xf32>
    tpu.vector_store %arg8[%c0_17, %c0_18], %33 {strides = array<i32>} : memref<8x128xf32, #tpu.memory_space<vmem>>, vector<8x128xf32>,
    return
  }
  func.func @transform_0(%arg0: i32) -> (i32, i32) {
    %c0_i32 = arith.constant 0 : i32
    %c0_i32_0 = arith.constant 0 : i32
    return %arg0, %c0_i32 : i32, i32
  }
  func.func @transform_1(%arg0: i32) -> (i32, i32) {
    %c0_i32 = arith.constant 0 : i32
    %c0_i32_0 = arith.constant 0 : i32
    %c0_i32_1 = arith.constant 0 : i32
    return %c0_i32, %c0_i32_0 : i32, i32
  }
  func.func @transform_2(%arg0: i32) -> (i32, i32) {
    %c0_i32 = arith.constant 0 : i32
    %c0_i32_0 = arith.constant 0 : i32
    %c0_i32_1 = arith.constant 0 : i32
    return %c0_i32, %c0_i32_0 : i32, i32
  }
  func.func @transform_3(%arg0: i32) -> (i32, i32) {
    %c0_i32 = arith.constant 0 : i32
    %c0_i32_0 = arith.constant 0 : i32
    %c0_i32_1 = arith.constant 0 : i32
    return %c0_i32, %c0_i32_0 : i32, i32
  }
  func.func @transform_4(%arg0: i32) -> (i32, i32) {
    %c0_i32 = arith.constant 0 : i32
    %c0_i32_0 = arith.constant 0 : i32
    %c0_i32_1 = arith.constant 0 : i32
    return %c0_i32, %c0_i32_0 : i32, i32
  }
  func.func @transform_5(%arg0: i32) -> (i32, i32) {
    %c0_i32 = arith.constant 0 : i32
    %c0_i32_0 = arith.constant 0 : i32
    %c0_i32_1 = arith.constant 0 : i32
    return %c0_i32, %c0_i32_0 : i32, i32
  }
  func.func @transform_6(%arg0: i32) -> (i32, i32) {
    %c0_i32 = arith.constant 0 : i32
    %c0_i32_0 = arith.constant 0 : i32
    %c0_i32_1 = arith.constant 0 : i32
    return %c0_i32, %c0_i32_0 : i32, i32
  }
  func.func @transform_7(%arg0: i32) -> (i32, i32) {
    %c0_i32 = arith.constant 0 : i32
    %c0_i32_0 = arith.constant 0 : i32
    return %arg0, %c0_i32 : i32, i32
  }
}

</mosaic_0001>

<llo_original>
// kernel: tpu_custom_call.1
$region0: #{tpu_custom_call.1}
  #allocation0 [shape = 'u32[]', space=smem, size = 0x4, offset = 0x4, fixed_abs, tag = 'smem constant byte address 0x4 - core index']
  #allocation1 [shape = 'u32[144,128]{1,0:T(1,128)}', space=vmem, size = 0x12000, scoped, tag = 'internal scratch']
  %s0 = inlined_call_operand.vmem [shape: f32[8,1], index: 0, kind: input, shape index: {}]
  %s1 = inlined_call_operand.vmem [shape: f32[1,256], index: 1, kind: input, shape index: {}]
  %s2 = inlined_call_operand.vmem [shape: f32[1,256], index: 2, kind: input, shape index: {}]
  %s3 = inlined_call_operand.hbm [shape: f32[256,256], index: 3, kind: input, shape index: {}]
  %s4 = inlined_call_operand.vmem [shape: f32[1,256], index: 4, kind: input, shape index: {}]
  %s5 = inlined_call_operand.hbm [shape: f32[256,128], index: 5, kind: input, shape index: {}]
  %s6 = inlined_call_operand.vmem [shape: f32[1,128], index: 6, kind: input, shape index: {}]
  %s7 = inlined_call_operand.hbm [shape: f32[8,128], index: 7, kind: output, shape index: {}]
  %s8 = sld [smem:[#allocation0]]
  $region46: #{tpu_custom_call.1} parent=0
    _
  %s10 = ssub.s32 1, %s8
  %s11 = scalar_select 0, %s10, %s8
  $region1: #{tpu_custom_call.1} parent=0
    #allocation2 [shape = 'u8[262144]{0}', space=vmem, size = 0x40000, scoped, tag = 'input window, operand 3, single buffered']
    #allocation3 [shape = 's32[1]{0}', space=sflag, size = 0x4, scoped, tag = 'scoped memory for tpu_custom_call.1']
    #allocation4 [shape = 's32[1]{0}', space=sflag, size = 0x4, scoped, tag = 'scoped memory for tpu_custom_call.1']
    #allocation5 [shape = 'u8[131072]{0}', space=vmem, size = 0x20000, scoped, tag = 'input window, operand 5, single buffered']
    #allocation6 [shape = 's32[1]{0}', space=sflag, size = 0x4, scoped, tag = 'scoped memory for tpu_custom_call.1']
    #allocation7 [shape = 'u8[4096]{0}', space=vmem, size = 0x1000, scoped, tag = 'output window, operand 0, single buffered']
    %12 = vsyncpa [#allocation3], 0
    %13 = vsyncpa [#allocation6], 0
    %14 = vsyncpa [#allocation4], 0
    // Predicated region
    $region2: #{tpu_custom_call.1} parent=1 // pred_check
      _
    $region3: #{tpu_custom_call.1} parent=1 // pred_check_branch
      %16 = sbr.rel (0) target = $region5
    $region4: #{tpu_custom_call.1} parent=1 // pred_region
      _
    $region5: #{tpu_custom_call.1} parent=1 // pred_fallthru
      _
    // Predicated region
    $region6: #{tpu_custom_call.1} parent=1 // pred_check
      _
    $region7: #{tpu_custom_call.1} parent=1 // pred_check_branch
      %18 = sbr.rel (0) target = $region9
    $region8: #{tpu_custom_call.1} parent=1 // pred_region
      _
    $region9: #{tpu_custom_call.1} parent=1 // pred_fallthru
      _
    // Predicated region
    $region10: #{tpu_custom_call.1} parent=1 // pred_check
      _
    $region11: #{tpu_custom_call.1} parent=1 // pred_check_branch
      %20 = sbr.rel (0) target = $region13
    $region12: #{tpu_custom_call.1} parent=1 // pred_region
      _
    $region13: #{tpu_custom_call.1} parent=1 // pred_fallthru
      _
    // Predicated region
    $region14: #{tpu_custom_call.1} parent=1 // pred_check
      _
    $region15: #{tpu_custom_call.1} parent=1 // pred_check_branch
      %22 = sbr.rel (0) target = $region17
    $region16: #{tpu_custom_call.1} parent=1 // pred_region
      %s24 = ssub.s32 8192, 8192
      %25 = vsyncadd [#allocation3], %s24
      %s26 = sshll.u32 [#allocation2], 4
      %s27 = int_to_ptr.vmem [resolvable:$true] %s26
      %32 = dma.hbm_to_vmem [thread:$0]  %s3, 8192, %s27, [#allocation3], 256, 256, 16
    $region17: #{tpu_custom_call.1} parent=1 // pred_fallthru
      _
    // Predicated region
    $region18: #{tpu_custom_call.1} parent=1 // pred_check
      _
    $region19: #{tpu_custom_call.1} parent=1 // pred_check_branch
      %34 = sbr.rel (0) target = $region21
    $region20: #{tpu_custom_call.1} parent=1 // pred_region
      _
    $region21: #{tpu_custom_call.1} parent=1 // pred_fallthru
      _
    // Predicated region
    $region22: #{tpu_custom_call.1} parent=1 // pred_check
      _
    $region23: #{tpu_custom_call.1} parent=1 // pred_check_branch
      %36 = sbr.rel (0) target = $region25
    $region24: #{tpu_custom_call.1} parent=1 // pred_region
      %s38 = ssub.s32 4096, 4096
      %39 = vsyncadd [#allocation6], %s38
      %s40 = sshll.u32 [#allocation5], 4
      %s41 = int_to_ptr.vmem [resolvable:$true] %s40
      %46 = dma.hbm_to_vmem [thread:$0]  %s5, 4096, %s41, [#allocation6], 128, 128, 8
    $region25: #{tpu_custom_call.1} parent=1 // pred_fallthru
      _
    // Predicated region
    $region26: #{tpu_custom_call.1} parent=1 // pred_check
      _
    $region27: #{tpu_custom_call.1} parent=1 // pred_check_branch
      %48 = sbr.rel (0) target = $region29
    $region28: #{tpu_custom_call.1} parent=1 // pred_region
      _
    $region29: #{tpu_custom_call.1} parent=1 // pred_fallthru
      _
    // Predicated region
    $region30: #{tpu_custom_call.1} parent=1 // pred_check
      _
    $region31: #{tpu_custom_call.1} parent=1 // pred_check_branch
      %50 = sbr.rel (0) target = $region33
    $region32: #{tpu_custom_call.1} parent=1 // pred_region
      %51 = dma.done [#allocation3], 8192
    $region33: #{tpu_custom_call.1} parent=1 // pred_fallthru
      _
    // Predicated region
    $region34: #{tpu_custom_call.1} parent=1 // pred_check
      _
    $region35: #{tpu_custom_call.1} parent=1 // pred_check_branch
      %53 = sbr.rel (0) target = $region37
    $region36: #{tpu_custom_call.1} parent=1 // pred_region
      %54 = dma.done [#allocation6], 4096
    $region37: #{tpu_custom_call.1} parent=1 // pred_fallthru
      _
    %v55 = vld [vmem:[%s0] sm:$0xff]
    %v56 = vld [vmem:[%s1] sm:$0x3]
    %58 = vset.pattern.permute.xlu0 0
    %59 = vperm.xlu0 %58, %v55
    %v60 = vpop.permute.xlu0 %59
    %v63 = vlaneseq
    %v64 = vshrl.u32 %v63, 7
    %v65 = vsub.s32 0, %v64
    %v66 = vrot.slane %v56, %v65
    %v67 = vlaneseq
    %v68 = vshrl.u32 %v67, 7
    %v69 = vsub.s32 1, %v68
    %v70 = vrot.slane %v56, %v69
    %v73 = vmul.f32 %v60, %v66
    %v74 = vmul.f32 %v60, %v70
    %v75 = vld [vmem:[%s2] sm:$0x3]
    %v77 = vlaneseq
    %v78 = vshrl.u32 %v77, 7
    %v79 = vsub.s32 0, %v78
    %v80 = vrot.slane %v75, %v79
    %v81 = vlaneseq
    %v82 = vshrl.u32 %v81, 7
    %v83 = vsub.s32 1, %v82
    %v84 = vrot.slane %v75, %v83
    %v87 = vadd.f32 %v73, %v80
    %v88 = vadd.f32 %v74, %v84
    %v89 = vmax.f32 %v87, 0.0
    %v90 = vmax.f32 %v88, 0.0
    %v91 = vld [vmem:[#allocation2] sm:$0xff]
    %v92 = vld [vmem:[#allocation2 + $0x8] sm:$0xff]
    %v93 = vld [vmem:[#allocation2 + $0x10] sm:$0xff]
    %v94 = vld [vmem:[#allocation2 + $0x18] sm:$0xff]
    %v95 = vld [vmem:[#allocation2 + $0x20] sm:$0xff]
    %v96 = vld [vmem:[#allocation2 + $0x28] sm:$0xff]
    %v97 = vld [vmem:[#allocation2 + $0x30] sm:$0xff]
    %v98 = vld [vmem:[#allocation2 + $0x38] sm:$0xff]
    %v99 = vld [vmem:[#allocation2 + $0x40] sm:$0xff]
    %v100 = vld [vmem:[#allocation2 + $0x48] sm:$0xff]
    %v101 = vld [vmem:[#allocation2 + $0x50] sm:$0xff]
    %v102 = vld [vmem:[#allocation2 + $0x58] sm:$0xff]
    %v103 = vld [vmem:[#allocation2 + $0x60] sm:$0xff]
    %v104 = vld [vmem:[#allocation2 + $0x68] sm:$0xff]
    %v105 = vld [vmem:[#allocation2 + $0x70] sm:$0xff]
    %v106 = vld [vmem:[#allocation2 + $0x78] sm:$0xff]
    %v107 = vld [vmem:[#allocation2 + $0x80] sm:$0xff]
    %v108 = vld [vmem:[#allocation2 + $0x88] sm:$0xff]
    %v109 = vld [vmem:[#allocation2 + $0x90] sm:$0xff]
    %v110 = vld [vmem:[#allocation2 + $0x98] sm:$0xff]
    %v111 = vld [vmem:[#allocation2 + $0xa0] sm:$0xff]
    %v112 = vld [vmem:[#allocation2 + $0xa8] sm:$0xff]
    %v113 = vld [vmem:[#allocation2 + $0xb0] sm:$0xff]
    %v114 = vld [vmem:[#allocation2 + $0xb8] sm:$0xff]
    %v115 = vld [vmem:[#allocation2 + $0xc0] sm:$0xff]
    %v116 = vld [vmem:[#allocation2 + $0xc8] sm:$0xff]
    %v117 = vld [vmem:[#allocation2 + $0xd0] sm:$0xff]
    %v118 = vld [vmem:[#allocation2 + $0xd8] sm:$0xff]
    %v119 = vld [vmem:[#allocation2 + $0xe0] sm:$0xff]
    %v120 = vld [vmem:[#allocation2 + $0xe8] sm:$0xff]
    %v121 = vld [vmem:[#allocation2 + $0xf0] sm:$0xff]
    %v122 = vld [vmem:[#allocation2 + $0xf8] sm:$0xff]
    %v123 = vld [vmem:[#allocation2 + $0x100] sm:$0xff]
    %v124 = vld [vmem:[#allocation2 + $0x108] sm:$0xff]
    %v125 = vld [vmem:[#allocation2 + $0x110] sm:$0xff]
    %v126 = vld [vmem:[#allocation2 + $0x118] sm:$0xff]
    %v127 = vld [vmem:[#allocation2 + $0x120] sm:$0xff]
    %v128 = vld [vmem:[#allocation2 + $0x128] sm:$0xff]
    %v129 = vld [vmem:[#allocation2 + $0x130] sm:$0xff]
    %v130 = vld [vmem:[#allocation2 + $0x138] sm:$0xff]
    %v131 = vld [vmem:[#allocation2 + $0x140] sm:$0xff]
    %v132 = vld [vmem:[#allocation2 + $0x148] sm:$0xff]
    %v133 = vld [vmem:[#allocation2 + $0x150] sm:$0xff]
    %v134 = vld [vmem:[#allocation2 + $0x158] sm:$0xff]
    %v135 = vld [vmem:[#allocation2 + $0x160] sm:$0xff]
    %v136 = vld [vmem:[#allocation2 + $0x168] sm:$0xff]
    %v137 = vld [vmem:[#allocation2 + $0x170] sm:$0xff]
    %v138 = vld [vmem:[#allocation2 + $0x178] sm:$0xff]
    %v139 = vld [vmem:[#allocation2 + $0x180] sm:$0xff]
    %v140 = vld [vmem:[#allocation2 + $0x188] sm:$0xff]
    %v141 = vld [vmem:[#allocation2 + $0x190] sm:$0xff]
    %v142 = vld [vmem:[#allocation2 + $0x198] sm:$0xff]
    %v143 = vld [vmem:[#allocation2 + $0x1a0] sm:$0xff]
    %v144 = vld [vmem:[#allocation2 + $0x1a8] sm:$0xff]
    %v145 = vld [vmem:[#allocation2 + $0x1b0] sm:$0xff]
    %v146 = vld [vmem:[#allocation2 + $0x1b8] sm:$0xff]
    %v147 = vld [vmem:[#allocation2 + $0x1c0] sm:$0xff]
    %v148 = vld [vmem:[#allocation2 + $0x1c8] sm:$0xff]
    %v149 = vld [vmem:[#allocation2 + $0x1d0] sm:$0xff]
    %v150 = vld [vmem:[#allocation2 + $0x1d8] sm:$0xff]
    %v151 = vld [vmem:[#allocation2 + $0x1e0] sm:$0xff]
    %v152 = vld [vmem:[#allocation2 + $0x1e8] sm:$0xff]
    %v153 = vld [vmem:[#allocation2 + $0x1f0] sm:$0xff]
    %v154 = vld [vmem:[#allocation2 + $0x1f8] sm:$0xff]
    %v155 = vld [vmem:[%s4] sm:$0x3]
    %v157 = vlaneseq
    %v158 = vshrl.u32 %v157, 7
    %v159 = vsub.s32 0, %v158
    %v160 = vrot.slane %v155, %v159
    %v161 = vlaneseq
    %v162 = vshrl.u32 %v161, 7
    %v163 = vsub.s32 1, %v162
    %v164 = vrot.slane %v155, %v163
    %167 = vmatprep.subr.mxu0 %v92
    %168 = vmatpush1.msra.mxu0 %v91
    %169 = vmatprep.subr.mxu0 %v94
    %170 = vmatpush1.msra.mxu0 %v93
    %171 = vmatprep.subr.mxu0 %v96
    %172 = vmatpush1.msra.mxu0 %v95
    %173 = vmatprep.subr.mxu0 %v98
    %174 = vmatpush1.msra.mxu0 %v97
    %175 = vmatprep.subr.mxu0 %v100
    %176 = vmatpush1.msra.mxu0 %v99
    %177 = vmatprep.subr.mxu0 %v102
    %178 = vmatpush1.msra.mxu0 %v101
    %179 = vmatprep.subr.mxu0 %v104
    %180 = vmatpush1.msra.mxu0 %v103
    %181 = vmatprep.subr.mxu0 %v106
    %182 = vmatpush1.msra.mxu0 %v105
    %183 = vmatprep.subr.mxu0 %v108
    %184 = vmatpush1.msra.mxu0 %v107
    %185 = vmatprep.subr.mxu0 %v110
    %186 = vmatpush1.msra.mxu0 %v109
    %187 = vmatprep.subr.mxu0 %v112
    %188 = vmatpush1.msra.mxu0 %v111
    %189 = vmatprep.subr.mxu0 %v114
    %190 = vmatpush1.msra.mxu0 %v113
    %191 = vmatprep.subr.mxu0 %v116
    %192 = vmatpush1.msra.mxu0 %v115
    %193 = vmatprep.subr.mxu0 %v118
    %194 = vmatpush1.msra.mxu0 %v117
    %195 = vmatprep.subr.mxu0 %v120
    %196 = vmatpush1.msra.mxu0 %v119
    %197 = vmatprep.subr.mxu0 %v122
    %198 = vmatpush1.msra.mxu0 %v121
    %199 = vmatprep.subr.mxu0 %v124
    %200 = vmatpush1.msra.mxu0 %v123
    %201 = vmatprep.subr.mxu0 %v126
    %202 = vmatpush1.msra.mxu0 %v125
    %203 = vmatprep.subr.mxu0 %v128
    %204 = vmatpush1.msra.mxu0 %v127
    %205 = vmatprep.subr.mxu0 %v130
    %206 = vmatpush1.msra.mxu0 %v129
    %207 = vmatprep.subr.mxu0 %v132
    %208 = vmatpush1.msra.mxu0 %v131
    %209 = vmatprep.subr.mxu0 %v134
    %210 = vmatpush1.msra.mxu0 %v133
    %211 = vmatprep.subr.mxu0 %v136
    %212 = vmatpush1.msra.mxu0 %v135
    %213 = vmatprep.subr.mxu0 %v138
    %214 = vmatpush1.msra.mxu0 %v137
    %215 = vmatprep.subr.mxu0 %v140
    %216 = vmatpush1.msra.mxu0 %v139
    %217 = vmatprep.subr.mxu0 %v142
    %218 = vmatpush1.msra.mxu0 %v141
    %219 = vmatprep.subr.mxu0 %v144
    %220 = vmatpush1.msra.mxu0 %v143
    %221 = vmatprep.subr.mxu0 %v146
    %222 = vmatpush1.msra.mxu0 %v145
    %223 = vmatprep.subr.mxu0 %v148
    %224 = vmatpush1.msra.mxu0 %v147
    %225 = vmatprep.subr.mxu0 %v150
    %226 = vmatpush1.msra.mxu0 %v149
    %227 = vmatprep.subr.mxu0 %v152
    %228 = vmatpush1.msra.mxu0 %v151
    %229 = vmatprep.subr.mxu0 %v154
    %230 = vmatpush1.msra.mxu0 %v153
    %231 = vmatprep.mubr.f32.mxu0 %v90
    %232 = vmatmul.mubr.f32.gmra.mrb[0].mxu0 %v89
    %v233 = vpop.f32.mrb[0].mxu0
    %v234 = vadd.f32 %v160, %v233
    %v235 = vpop.f32.mrb[0].mxu0
    %v236 = vadd.f32 %v164, %v235
    %237 = vdwg.mxu0
    %v238 = vmax.f32 %v234, 0.0
    %v239 = vmax.f32 %v236, 0.0
    %v240 = vld [vmem:[#allocation5] sm:$0xff]
    %v241 = vld [vmem:[#allocation5 + $0x8] sm:$0xff]
    %v242 = vld [vmem:[#allocation5 + $0x10] sm:$0xff]
    %v243 = vld [vmem:[#allocation5 + $0x18] sm:$0xff]
    %v244 = vld [vmem:[#allocation5 + $0x20] sm:$0xff]
    %v245 = vld [vmem:[#allocation5 + $0x28] sm:$0xff]
    %v246 = vld [vmem:[#allocation5 + $0x30] sm:$0xff]
    %v247 = vld [vmem:[#allocation5 + $0x38] sm:$0xff]
    %v248 = vld [vmem:[#allocation5 + $0x40] sm:$0xff]
    %v249 = vld [vmem:[#allocation5 + $0x48] sm:$0xff]
    %v250 = vld [vmem:[#allocation5 + $0x50] sm:$0xff]
    %v251 = vld [vmem:[#allocation5 + $0x58] sm:$0xff]
    %v252 = vld [vmem:[#allocation5 + $0x60] sm:$0xff]
    %v253 = vld [vmem:[#allocation5 + $0x68] sm:$0xff]
    %v254 = vld [vmem:[#allocation5 + $0x70] sm:$0xff]
    %v255 = vld [vmem:[#allocation5 + $0x78] sm:$0xff]
    %v256 = vld [vmem:[#allocation5 + $0x80] sm:$0xff]
    %v257 = vld [vmem:[#allocation5 + $0x88] sm:$0xff]
    %v258 = vld [vmem:[#allocation5 + $0x90] sm:$0xff]
    %v259 = vld [vmem:[#allocation5 + $0x98] sm:$0xff]
    %v260 = vld [vmem:[#allocation5 + $0xa0] sm:$0xff]
    %v261 = vld [vmem:[#allocation5 + $0xa8] sm:$0xff]
    %v262 = vld [vmem:[#allocation5 + $0xb0] sm:$0xff]
    %v263 = vld [vmem:[#allocation5 + $0xb8] sm:$0xff]
    %v264 = vld [vmem:[#allocation5 + $0xc0] sm:$0xff]
    %v265 = vld [vmem:[#allocation5 + $0xc8] sm:$0xff]
    %v266 = vld [vmem:[#allocation5 + $0xd0] sm:$0xff]
    %v267 = vld [vmem:[#allocation5 + $0xd8] sm:$0xff]
    %v268 = vld [vmem:[#allocation5 + $0xe0] sm:$0xff]
    %v269 = vld [vmem:[#allocation5 + $0xe8] sm:$0xff]
    %v270 = vld [vmem:[#allocation5 + $0xf0] sm:$0xff]
    %v271 = vld [vmem:[#allocation5 + $0xf8] sm:$0xff]
    %v272 = vld [vmem:[%s6] sm:$0x1]
    %v274 = vlaneseq
    %v275 = vshrl.u32 %v274, 7
    %v276 = vsub.s32 0, %v275
    %v277 = vrot.slane %v272, %v276
    %279 = vmatprep.subr.mxu0 0.0
    %280 = vmatpush1.msra.mxu0 %v240
    %281 = vmatprep.subr.mxu0 0.0
    %282 = vmatpush1.msra.mxu0 %v241
    %283 = vmatprep.subr.mxu0 0.0
    %284 = vmatpush1.msra.mxu0 %v242
    %285 = vmatprep.subr.mxu0 0.0
    %286 = vmatpush1.msra.mxu0 %v243
    %287 = vmatprep.subr.mxu0 0.0
    %288 = vmatpush1.msra.mxu0 %v244
    %289 = vmatprep.subr.mxu0 0.0
    %290 = vmatpush1.msra.mxu0 %v245
    %291 = vmatprep.subr.mxu0 0.0
    %292 = vmatpush1.msra.mxu0 %v246
    %293 = vmatprep.subr.mxu0 0.0
    %294 = vmatpush1.msra.mxu0 %v247
    %295 = vmatprep.subr.mxu0 0.0
    %296 = vmatpush1.msra.mxu0 %v248
    %297 = vmatprep.subr.mxu0 0.0
    %298 = vmatpush1.msra.mxu0 %v249
    %299 = vmatprep.subr.mxu0 0.0
    %300 = vmatpush1.msra.mxu0 %v250
    %301 = vmatprep.subr.mxu0 0.0
    %302 = vmatpush1.msra.mxu0 %v251
    %303 = vmatprep.subr.mxu0 0.0
    %304 = vmatpush1.msra.mxu0 %v252
    %305 = vmatprep.subr.mxu0 0.0
    %306 = vmatpush1.msra.mxu0 %v253
    %307 = vmatprep.subr.mxu0 0.0
    %308 = vmatpush1.msra.mxu0 %v254
    %309 = vmatprep.subr.mxu0 0.0
    %310 = vmatpush1.msra.mxu0 %v255
    %311 = vmatprep.subr.mxu0 0.0
    %312 = vmatpush1.msra.mxu0 %v256
    %313 = vmatprep.subr.mxu0 0.0
    %314 = vmatpush1.msra.mxu0 %v257
    %315 = vmatprep.subr.mxu0 0.0
    %316 = vmatpush1.msra.mxu0 %v258
    %317 = vmatprep.subr.mxu0 0.0
    %318 = vmatpush1.msra.mxu0 %v259
    %319 = vmatprep.subr.mxu0 0.0
    %320 = vmatpush1.msra.mxu0 %v260
    %321 = vmatprep.subr.mxu0 0.0
    %322 = vmatpush1.msra.mxu0 %v261
    %323 = vmatprep.subr.mxu0 0.0
    %324 = vmatpush1.msra.mxu0 %v262
    %325 = vmatprep.subr.mxu0 0.0
    %326 = vmatpush1.msra.mxu0 %v263
    %327 = vmatprep.subr.mxu0 0.0
    %328 = vmatpush1.msra.mxu0 %v264
    %329 = vmatprep.subr.mxu0 0.0
    %330 = vmatpush1.msra.mxu0 %v265
    %331 = vmatprep.subr.mxu0 0.0
    %332 = vmatpush1.msra.mxu0 %v266
    %333 = vmatprep.subr.mxu0 0.0
    %334 = vmatpush1.msra.mxu0 %v267
    %335 = vmatprep.subr.mxu0 0.0
    %336 = vmatpush1.msra.mxu0 %v268
    %337 = vmatprep.subr.mxu0 0.0
    %338 = vmatpush1.msra.mxu0 %v269
    %339 = vmatprep.subr.mxu0 0.0
    %340 = vmatpush1.msra.mxu0 %v270
    %341 = vmatprep.subr.mxu0 0.0
    %342 = vmatpush1.msra.mxu0 %v271
    %343 = vmatprep.mubr.f32.mxu0 %v239
    %344 = vmatmul.mubr.f32.gmra.mrb[0].mxu0 %v238
    %v345 = vpop.f32.mrb[0].mxu0
    %v346 = vadd.f32 %v277, %v345
    %v347 = vpop.f32.mrb[0].mxu0
    %348 = vdwg.mxu0
    %v349 = vlaneseq
    %v350 = vand.u32 %v349, 127
    %vm351 = vcmp.ge.s32.totalorder %v350, 8
    %vm352 = vcmp.lt.s32.totalorder %v350, 12
    %vm353 = vmand %vm351, %vm352
    %v354 = vxor.u32 %v346, 2147483648
    %v355 = vmul.f32 %v354, 1.442695
    %v356 = vpow.pop %v355
    %v357 = vadd.f32 %v356, 1.0
    %v358 = vrcp.pop %v357
    %v359 = vmul.f32 1.0, %v358
    %v360 = vsel %vm353, %v359, %v346
    %361 = vst [vmem:[#allocation7] sm:$0xff] %v360
    // Predicated region
    $region38: #{tpu_custom_call.1} parent=1 // pred_check
      _
    $region39: #{tpu_custom_call.1} parent=1 // pred_check_branch
      %363 = sbr.rel (0) target = $region41
    $region40: #{tpu_custom_call.1} parent=1 // pred_region
      %s365 = ssub.s32 128, 128
      %366 = vsyncadd [#allocation4], %s365
      %s368 = sshll.u32 [#allocation7], 4
      %s369 = int_to_ptr.vmem [resolvable:$true] %s368
      %371 = dma.vmem_to_hbm [thread:$0]  %s369, 128, %s7, [#allocation4]
    $region41: #{tpu_custom_call.1} parent=1 // pred_fallthru
      _
    // Predicated region
    $region42: #{tpu_custom_call.1} parent=1 // pred_check
      _
    $region43: #{tpu_custom_call.1} parent=1 // pred_check_branch
      %373 = sbr.rel (0) target = $region45
    $region44: #{tpu_custom_call.1} parent=1 // pred_region
      %374 = dma.done [#allocation4], 128
    $region45: #{tpu_custom_call.1} parent=1 // pred_fallthru
      _
    %375 = vsyncpa [#allocation3], 1
    %376 = vsyncpa [#allocation6], 1
    %377 = vsyncpa [#allocation4], 1

</llo_original>
